<compile_context>
chip_gen: v5e
topology: v5e:2x2
jax: 0.10.0
libtpu: 0.0.40
codegen_flags: <defaults>
</compile_context>

<pallas_src>
import jax
import jax.numpy as jnp
from jax.experimental import pallas as pl
from jax.experimental.pallas import tpu as pltpu


def _same_pad(ksize, stride):
    """PyTorch Conv2dSame padding: (left, right)."""
    left = (ksize - stride) // 2
    right = (ksize - stride) - left
    return left, right


def _round_up(x, m):
    return -(-x // m) * m


def _make_kernel(Cin, Cout, KH, KW, stride, Wps, Lpad):
    s = stride

    def kernel(x_ref, w_ref, b_ref, o_ref):
        # x_ref: (1, s*s*Cin, flat_pad)  phase-decomposed, row-flattened input
        # w_ref: (KH, Cout, KW*Cin)      per-kh weight blocks, (kw, ci)-minor rows
        # b_ref: (Cout, 1)               f32 bias (lane-broadcast add)
        # o_ref: (1, Cout, Lpad)         lane-dense flat output, Lpad % 128 == 0
        x = x_ref[0]                                        # (s*s*Cin, flat_pad)

        # Tap (kh, kw) of a stride-s conv is a pure lane-shift of phase image
        # (kh%s, kw%s) by (kh//s)*Wps + (kw//s): every slice below is a static
        # contiguous 2D slice.  Accumulate one MXU dot per kh (K = KW*Cin) into
        # an f32 register accumulator -- no KH*KW*Cin x L im2col temp.
        acc = None
        for kh in range(KH):                                # static, unrolled
            cols = []
            for kw in range(KW):
                p = (kh % s) * s + (kw % s)                 # which phase image
                off = (kh // s) * Wps + (kw // s)           # flat lane shift
                cols.append(x[p * Cin:(p + 1) * Cin, off:off + Lpad])
            xk = cols[0] if KW == 1 else jnp.concatenate(cols, axis=0)
            d = jnp.dot(w_ref[kh], xk,
                        preferred_element_type=jnp.float32)  # (Cout, Lpad) f32
            acc = d if acc is None else acc + d
        o_ref[0] = (acc + b_ref[...]).astype(o_ref.dtype)    # one unmasked store

    return kernel


def conv2d_same(x_nchw, weight, bias, stride, *, compute_dtype=jnp.bfloat16):
    """weight: (Cout, Cin, KH, KW) as in nn.Conv2d; bias: (Cout,). NCHW in/out.

    compute_dtype: dtype of the MXU operands (default bf16; accumulation is
    always f32). Pass jnp.float32 for bit-tight numerics.
    """
    N, Cin, H, W = x_nchw.shape
    Cout, Cin_w, KH, KW = weight.shape
    assert Cin == Cin_w
    s = int(stride)
    assert KH >= s and KW >= s, "Conv2dSame requires kernel_size >= stride"

    lh, rh = _same_pad(KH, s)
    lw, rw = _same_pad(KW, s)
    Ho = (H + lh + rh - KH) // s + 1
    Wo = (W + lw + rw - KW) // s + 1

    # Same-pad, plus extra bottom/right zeros so padded dims are divisible by
    # the stride (the extra zeros are never read by a valid output window).
    Hp, Wp = H + lh + rh, W + lw + rw
    Hps, Wps = -(-Hp // s), -(-Wp // s)

    L = Ho * Wps                       # valid flat output length (with seams)
    Lpad = _round_up(L, 128)           # lane-dense store width
    max_off = ((KH - 1) // s) * Wps + (KW - 1) // s
    flat = Hps * Wps
    flat_pad = max(flat, max_off + Lpad)   # keep the widest tap slice in bounds

    xp = jnp.pad(x_nchw, ((0, 0), (0, 0),
                          (lh, rh + (Hps * s - Hp)),
                          (lw, rw + (Wps * s - Wp))))

    # Space-to-depth (phase decomposition): every conv tap becomes a contiguous
    # lane window of one phase image.  Single fused XLA pass on a tiny input.
    xph = xp.reshape(N, Cin, Hps, s, Wps, s)
    xph = jnp.transpose(xph, (0, 3, 5, 1, 2, 4))      # (N, ph, pw, Cin, Hps, Wps)
    xph = xph.reshape(N, s * s * Cin, flat)
    if flat_pad > flat:
        xph = jnp.pad(xph, ((0, 0), (0, 0), (0, flat_pad - flat)))

    # Weight -> (KH, Cout, KW*Cin), row order (kw, ci) matching the in-kernel
    # per-kh concat; bias -> (Cout, 1) kept in f32.
    w2 = jnp.transpose(weight, (2, 0, 3, 1)).reshape(KH, Cout, KW * Cin)
    b2 = bias.reshape(Cout, 1).astype(jnp.float32)

    if compute_dtype is not None:
        xph = xph.astype(compute_dtype)
        w2 = w2.astype(compute_dtype)

    kernel = _make_kernel(Cin, Cout, KH, KW, s, Wps, Lpad)
    out_flat = pl.pallas_call(
        kernel,
        out_shape=jax.ShapeDtypeStruct((N, Cout, Lpad), x_nchw.dtype),
        grid=(N,),
        in_specs=[
            pl.BlockSpec((1, s * s * Cin, flat_pad), lambda n: (n, 0, 0)),
            pl.BlockSpec((KH, Cout, KW * Cin), lambda n: (0, 0, 0)),
            pl.BlockSpec((Cout, 1), lambda n: (0, 0)),
        ],
        out_specs=pl.BlockSpec((1, Cout, Lpad), lambda n: (n, 0, 0)),
        compiler_params=pltpu.CompilerParams(
            dimension_semantics=("parallel",),
            vmem_limit_bytes=32 * 1024 * 1024),
    )(xph, w2, b2)

    # Drop pad lanes + seam columns and reshape flat -> (Ho, Wps) -> (Ho, Wo).
    # All slices/reshapes of the small output fuse into one copy under jit.
    return out_flat[:, :, :L].reshape(N, Cout, Ho, Wps)[:, :, :, :Wo]


def _reference(x_nchw, weight, bias, stride):
    """Pure-JAX reference: strided conv with PyTorch 'same' (maybe asymmetric) pad."""
    Cout, _, KH, KW = weight.shape
    lh, rh = _same_pad(KH, stride)
    lw, rw = _same_pad(KW, stride)
    y = jax.lax.conv_general_dilated(
        x_nchw, weight, window_strides=(stride, stride),
        padding=[(lh, rh), (lw, rw)],
        dimension_numbers=('NCHW', 'OIHW', 'NCHW'))
    return y + bias.reshape(1, Cout, 1, 1)


if __name__ == "__main__":
    key = jax.random.PRNGKey(0)
    kx, kw1, kb1, kw2, kb2 = jax.random.split(key, 5)

    N, Cin, H, W = 2, 4, 16, 16
    x = jax.random.normal(kx, (N, Cin, H, W), dtype=jnp.float32)

    # Case 1: Conv2dSame(4, 8, kernel_size=4, stride=2) -> even (k-s): symmetric pad
    Cout, K, s = 8, 4, 2
    w = 0.1 * jax.random.normal(kw1, (Cout, Cin, K, K), dtype=jnp.float32)
    b = 0.05 * jax.random.normal(kb1, (Cout,), dtype=jnp.float32)
    y_ref = _reference(x, w, b, s)

    # Default (bf16 operands on the MXU, f32 accumulation): loose tolerance.
    y = jax.block_until_ready(conv2d_same(x, w, b, s))
    assert y.shape == (N, Cout, H // s, W // s), y.shape
    assert jnp.allclose(y, y_ref, atol=5e-2, rtol=5e-2), float(
        jnp.max(jnp.abs(y - y_ref)))

    # f32 operands: tight tolerance (verifies the layout / tap indexing exactly).
    y_f32 = jax.block_until_ready(conv2d_same(x, w, b, s,
                                              compute_dtype=jnp.float32))
    assert jnp.allclose(y_f32, y_ref, atol=1e-4, rtol=1e-4), float(
        jnp.max(jnp.abs(y_f32 - y_ref)))

    # Case 2: Conv2dSame(4, 8, kernel_size=3, stride=2) -> odd (k-s): asymmetric pad
    K2 = 3
    w_b = 0.1 * jax.random.normal(kw2, (Cout, Cin, K2, K2), dtype=jnp.float32)
    b_b = 0.05 * jax.random.normal(kb2, (Cout,), dtype=jnp.float32)
    y2_ref = _reference(x, w_b, b_b, s)

    y2 = jax.block_until_ready(conv2d_same(x, w_b, b_b, s))
    assert y2.shape == y2_ref.shape, (y2.shape, y2_ref.shape)
    assert jnp.allclose(y2, y2_ref, atol=5e-2, rtol=5e-2), float(
        jnp.max(jnp.abs(y2 - y2_ref)))

    y2_f32 = jax.block_until_ready(conv2d_same(x, w_b, b_b, s,
                                               compute_dtype=jnp.float32))
    assert jnp.allclose(y2_f32, y2_ref, atol=1e-4, rtol=1e-4), float(
        jnp.max(jnp.abs(y2_f32 - y2_ref)))

    print("KERNEL_OK")
</pallas_src>

<mosaic_0001>
module attributes {stable_mosaic.version = 11 : i64} {
  func.func @kernel(%arg0: i32, %arg1: memref<1x16x138xbf16, #tpu.memory_space<vmem>>, %arg2: memref<4x8x16xbf16, #tpu.memory_space<vmem>>, %arg3: memref<8x1xf32, #tpu.memory_space<vmem>>, %arg4: memref<1x8x128xf32, #tpu.memory_space<vmem>>) attributes {dimension_semantics = [#tpu.dimension_semantics<parallel>], iteration_bounds = array<i64: 2>, scalar_prefetch = 0 : i64, scratch_operands = 0 : i64, tpu.core_type = #tpu.core_type<tc>, window_params = [{transform_indices = @transform_0, window_bounds = array<i64: 1, 16, 138>}, {pipeline_mode = #tpu.pipeline_mode<synchronous>, transform_indices = @transform_1, window_bounds = array<i64: 4, 8, 16>}, {pipeline_mode = #tpu.pipeline_mode<synchronous>, transform_indices = @transform_2, window_bounds = array<i64: 8, 1>}, {transform_indices = @transform_3, window_bounds = array<i64: 1, 8, 128>}]} {
    %c0 = arith.constant 0 : index
    %c0_0 = arith.constant 0 : index
    %c0_1 = arith.constant 0 : index
    %0 = vector.load %arg1[%c0, %c0_0, %c0_1] : memref<1x16x138xbf16, #tpu.memory_space<vmem>>, vector<1x16x138xbf16>
    %1 = vector.shape_cast %0 : vector<1x16x138xbf16> to vector<16x138xbf16>
    %2 = vector.extract_strided_slice %1 {offsets = [0, 0], sizes = [4, 128], strides = [1, 1]} : vector<16x138xbf16> to vector<4x128xbf16>
    %3 = vector.extract_strided_slice %1 {offsets = [4, 0], sizes = [4, 128], strides = [1, 1]} : vector<16x138xbf16> to vector<4x128xbf16>
    %4 = vector.extract_strided_slice %1 {offsets = [0, 1], sizes = [4, 128], strides = [1, 1]} : vector<16x138xbf16> to vector<4x128xbf16>
    %5 = vector.extract_strided_slice %1 {offsets = [4, 1], sizes = [4, 128], strides = [1, 1]} : vector<16x138xbf16> to vector<4x128xbf16>
    %6 = tpu.concatenate %2, %3, %4, %5 in 0 : vector<4x128xbf16>, vector<4x128xbf16>, vector<4x128xbf16>, vector<4x128xbf16> -> vector<16x128xbf16>
    %c0_2 = arith.constant 0 : index
    %c0_3 = arith.constant 0 : index
    %c0_4 = arith.constant 0 : index
    %7 = vector.load %arg2[%c0_2, %c0_3, %c0_4] : memref<4x8x16xbf16, #tpu.memory_space<vmem>>, vector<1x8x16xbf16>
    %8 = vector.shape_cast %7 : vector<1x8x16xbf16> to vector<8x16xbf16>
    %cst = arith.constant dense<0.000000e+00> : vector<8x128xf32>
    %9 = tpu.matmul %8, %6, %cst {dimension_numbers = #tpu.dot_dimension_numbers<[1], [0], [0], [1], [0, 0, 1, 1], [], []>} : vector<8x16xbf16>, vector<16x128xbf16>, vector<8x128xf32> -> vector<8x128xf32>
    %10 = vector.extract_strided_slice %1 {offsets = [8, 0], sizes = [4, 128], strides = [1, 1]} : vector<16x138xbf16> to vector<4x128xbf16>
    %11 = vector.extract_strided_slice %1 {offsets = [12, 0], sizes = [4, 128], strides = [1, 1]} : vector<16x138xbf16> to vector<4x128xbf16>
    %12 = vector.extract_strided_slice %1 {offsets = [8, 1], sizes = [4, 128], strides = [1, 1]} : vector<16x138xbf16> to vector<4x128xbf16>
    %13 = vector.extract_strided_slice %1 {offsets = [12, 1], sizes = [4, 128], strides = [1, 1]} : vector<16x138xbf16> to vector<4x128xbf16>
    %14 = tpu.concatenate %10, %11, %12, %13 in 0 : vector<4x128xbf16>, vector<4x128xbf16>, vector<4x128xbf16>, vector<4x128xbf16> -> vector<16x128xbf16>
    %c1 = arith.constant 1 : index
    %c0_5 = arith.constant 0 : index
    %c0_6 = arith.constant 0 : index
    %15 = vector.load %arg2[%c1, %c0_5, %c0_6] : memref<4x8x16xbf16, #tpu.memory_space<vmem>>, vector<1x8x16xbf16>
    %16 = vector.shape_cast %15 : vector<1x8x16xbf16> to vector<8x16xbf16>
    %cst_7 = arith.constant dense<0.000000e+00> : vector<8x128xf32>
    %17 = tpu.matmul %16, %14, %cst_7 {dimension_numbers = #tpu.dot_dimension_numbers<[1], [0], [0], [1], [0, 0, 1, 1], [], []>} : vector<8x16xbf16>, vector<16x128xbf16>, vector<8x128xf32> -> vector<8x128xf32>
    %18 = arith.addf %9, %17 : vector<8x128xf32>
    %19 = vector.extract_strided_slice %1 {offsets = [0, 9], sizes = [4, 128], strides = [1, 1]} : vector<16x138xbf16> to vector<4x128xbf16>
    %20 = vector.extract_strided_slice %1 {offsets = [4, 9], sizes = [4, 128], strides = [1, 1]} : vector<16x138xbf16> to vector<4x128xbf16>
    %21 = vector.extract_strided_slice %1 {offsets = [0, 10], sizes = [4, 128], strides = [1, 1]} : vector<16x138xbf16> to vector<4x128xbf16>
    %22 = vector.extract_strided_slice %1 {offsets = [4, 10], sizes = [4, 128], strides = [1, 1]} : vector<16x138xbf16> to vector<4x128xbf16>
    %23 = tpu.concatenate %19, %20, %21, %22 in 0 : vector<4x128xbf16>, vector<4x128xbf16>, vector<4x128xbf16>, vector<4x128xbf16> -> vector<16x128xbf16>
    %c2 = arith.constant 2 : index
    %c0_8 = arith.constant 0 : index
    %c0_9 = arith.constant 0 : index
    %24 = vector.load %arg2[%c2, %c0_8, %c0_9] : memref<4x8x16xbf16, #tpu.memory_space<vmem>>, vector<1x8x16xbf16>
    %25 = vector.shape_cast %24 : vector<1x8x16xbf16> to vector<8x16xbf16>
    %cst_10 = arith.constant dense<0.000000e+00> : vector<8x128xf32>
    %26 = tpu.matmul %25, %23, %cst_10 {dimension_numbers = #tpu.dot_dimension_numbers<[1], [0], [0], [1], [0, 0, 1, 1], [], []>} : vector<8x16xbf16>, vector<16x128xbf16>, vector<8x128xf32> -> vector<8x128xf32>
    %27 = arith.addf %18, %26 : vector<8x128xf32>
    %28 = vector.extract_strided_slice %1 {offsets = [8, 9], sizes = [4, 128], strides = [1, 1]} : vector<16x138xbf16> to vector<4x128xbf16>
    %29 = vector.extract_strided_slice %1 {offsets = [12, 9], sizes = [4, 128], strides = [1, 1]} : vector<16x138xbf16> to vector<4x128xbf16>
    %30 = vector.extract_strided_slice %1 {offsets = [8, 10], sizes = [4, 128], strides = [1, 1]} : vector<16x138xbf16> to vector<4x128xbf16>
    %31 = vector.extract_strided_slice %1 {offsets = [12, 10], sizes = [4, 128], strides = [1, 1]} : vector<16x138xbf16> to vector<4x128xbf16>
    %32 = tpu.concatenate %28, %29, %30, %31 in 0 : vector<4x128xbf16>, vector<4x128xbf16>, vector<4x128xbf16>, vector<4x128xbf16> -> vector<16x128xbf16>
    %c3 = arith.constant 3 : index
    %c0_11 = arith.constant 0 : index
    %c0_12 = arith.constant 0 : index
    %33 = vector.load %arg2[%c3, %c0_11, %c0_12] : memref<4x8x16xbf16, #tpu.memory_space<vmem>>, vector<1x8x16xbf16>
    %34 = vector.shape_cast %33 : vector<1x8x16xbf16> to vector<8x16xbf16>
    %cst_13 = arith.constant dense<0.000000e+00> : vector<8x128xf32>
    %35 = tpu.matmul %34, %32, %cst_13 {dimension_numbers = #tpu.dot_dimension_numbers<[1], [0], [0], [1], [0, 0, 1, 1], [], []>} : vector<8x16xbf16>, vector<16x128xbf16>, vector<8x128xf32> -> vector<8x128xf32>
    %36 = arith.addf %27, %35 : vector<8x128xf32>
    %c0_14 = arith.constant 0 : index
    %c0_15 = arith.constant 0 : index
    %37 = vector.load %arg3[%c0_14, %c0_15] : memref<8x1xf32, #tpu.memory_space<vmem>>, vector<8x1xf32>
    %38 = vector.broadcast %37 : vector<8x1xf32> to vector<8x128xf32>
    %39 = arith.addf %36, %38 : vector<8x128xf32>
    %c0_16 = arith.constant 0 : index
    %c0_17 = arith.constant 0 : index
    %c0_18 = arith.constant 0 : index
    %40 = vector.load %arg4[%c0_16, %c0_17, %c0_18] : memref<1x8x128xf32, #tpu.memory_space<vmem>>, vector<1x8x128xf32>
    %41 = vector.shape_cast %40 : vector<1x8x128xf32> to vector<8x128xf32>
    %42 = vector.shape_cast %39 : vector<8x128xf32> to vector<1x8x128xf32>
    tpu.vector_store %arg4[%c0_16, %c0_17, %c0_18], %42 {strides = array<i32>} : memref<1x8x128xf32, #tpu.memory_space<vmem>>, vector<1x8x128xf32>,
    return
  }
  func.func @transform_0(%arg0: i32) -> (i32, i32, i32) {
    %c0_i32 = arith.constant 0 : i32
    %c0_i32_0 = arith.constant 0 : i32
    %c0_i32_1 = arith.constant 0 : i32
    return %arg0, %c0_i32, %c0_i32_0 : i32, i32, i32
  }
  func.func @transform_1(%arg0: i32) -> (i32, i32, i32) {
    %c0_i32 = arith.constant 0 : i32
    %c0_i32_0 = arith.constant 0 : i32
    %c0_i32_1 = arith.constant 0 : i32
    %c0_i32_2 = arith.constant 0 : i32
    return %c0_i32, %c0_i32_0, %c0_i32_1 : i32, i32, i32
  }
  func.func @transform_2(%arg0: i32) -> (i32, i32) {
    %c0_i32 = arith.constant 0 : i32
    %c0_i32_0 = arith.constant 0 : i32
    %c0_i32_1 = arith.constant 0 : i32
    return %c0_i32, %c0_i32_0 : i32, i32
  }
  func.func @transform_3(%arg0: i32) -> (i32, i32, i32) {
    %c0_i32 = arith.constant 0 : i32
    %c0_i32_0 = arith.constant 0 : i32
    %c0_i32_1 = arith.constant 0 : i32
    return %arg0, %c0_i32, %c0_i32_0 : i32, i32, i32
  }
}

</mosaic_0001>

<llo_original>
// kernel: tpu_custom_call.1
$region0: #{tpu_custom_call.1}
  #allocation0 [shape = 'u32[]', space=smem, size = 0x4, offset = 0x4, fixed_abs, tag = 'smem constant byte address 0x4 - core index']
  #allocation1 [shape = 'u32[72,128]{1,0:T(1,128)}', space=vmem, size = 0x9000, scoped, tag = 'internal scratch']
  %s0 = inlined_call_operand.hbm [shape: bf16[2,16,138], index: 0, kind: input, shape index: {}]
  %s1 = inlined_call_operand.hbm [shape: bf16[4,8,16], index: 1, kind: input, shape index: {}]
  %s2 = inlined_call_operand.vmem [shape: f32[8,1], index: 2, kind: input, shape index: {}]
  %s3 = inlined_call_operand.hbm [shape: f32[2,8,128], index: 3, kind: output, shape index: {}]
  %s4 = sld [smem:[#allocation0]]
  $region53: #{tpu_custom_call.1} parent=0
    _
  %s6 = ssub.s32 1, %s4
  %s7 = scalar_select 0, %s6, %s4
  $region1: #{tpu_custom_call.1} parent=0
    #allocation2 [shape = 'u8[16384]{0}', space=vmem, size = 0x4000, scoped, tag = 'input window, operand 0']
    #allocation3 [shape = 's32[2]{0}', space=sflag, size = 0x8, scoped, tag = 'scoped memory for tpu_custom_call.1']
    #allocation4 [shape = 's32[2]{0}', space=sflag, size = 0x8, scoped, tag = 'scoped memory for tpu_custom_call.1']
    #allocation5 [shape = 'u8[8192]{0}', space=vmem, size = 0x2000, scoped, tag = 'input window, operand 1, single buffered']
    #allocation6 [shape = 's32[1]{0}', space=sflag, size = 0x4, scoped, tag = 'scoped memory for tpu_custom_call.1']
    #allocation7 [shape = 'u8[8192]{0}', space=vmem, size = 0x2000, scoped, tag = 'output window, operand 0']
    %8 = vsyncpa [#allocation3], 0
    %s9 = scalar_lea.sflag [#allocation3], 1
    %10 = vsyncpa %s9, 0
    %11 = vsyncpa [#allocation6], 0
    %12 = vsyncpa [#allocation4], 0
    %s13 = scalar_lea.sflag [#allocation4], 1
    %14 = vsyncpa %s13, 0
    loop: start=0, step=1, limit=4
    $region2: #{tpu_custom_call.1} parent=1 // loop_pre_header
      _
    $region3: #{tpu_custom_call.1} parent=1 // loop_header
      %s16 = sphi 0, %s20
      %p17 = scmp.ge.s32.totalorder %s16, 4
      %s26 = sphi 0, %s28
      %s29 = sphi 0, %s26
      %s30 = sphi 0, %s29
      %s46 = sphi 0, %s30
      %s50 = sphi 0, %s50
      %s52 = sphi 0, %s50
      %s53 = sphi 0, %s52
      %s67 = sphi 0, %s53
      %s71 = sphi 0, %s71
      %s73 = sphi 0, %s71
      %s74 = sphi 0, %s73
      %s88 = sphi 0, %s74
      %s94 = sphi 0, %s96
      %s97 = sphi 0, %s94
      %s98 = sphi 0, %s97
      %s114 = sphi 0, %s98
    $region4: #{tpu_custom_call.1} parent=1 // loop_header_branch
      %19 = sbr.rel (%p17) target = $region8
    $region5: #{tpu_custom_call.1} parent=1 // loop_body
      %s21 = ssub.s32 %s16, 1
      %s22 = ssub.s32 %s16, 2
      %s23 = sadd.s32 %s16, 1
      %s24 = ssub.s32 %s16, %s23
      %p25 = scmp.eq.s32.totalorder %s24, 0
      %s27 = sadd.s32 %s26, 1
      %s28 = scalar_select %p25, %s26, %s27
      %p31 = pneg %p25
      %p32 = scmp.eq.s32.totalorder %s16, 1
      %p33 = por %p31, %p32
      %p34 = scmp.ne.s32.totalorder %s26, %s29
      %p35 = scmp.eq.s32.totalorder %s16, 0
      %p36 = por %p34, %p35
      %p37 = scmp.ne.s32.totalorder %s26, %s29
      %p38 = scmp.eq.s32.totalorder %s21, 1
      %p39 = por %p37, %p38
      %p40 = scmp.ne.s32.totalorder %s29, %s30
      %p41 = scmp.eq.s32.totalorder %s21, 0
      %p42 = por %p40, %p41
      %p43 = scmp.ne.s32.totalorder %s29, %s30
      %p44 = scmp.eq.s32.totalorder %s22, 1
      %p45 = por %p43, %p44
      %p47 = scmp.ne.s32.totalorder %s30, %s46
      %p48 = scmp.eq.s32.totalorder %s22, 0
      %p49 = por %p47, %p48
      %s51 = sadd.s32 %s50, 1
      %p54 = scmp.eq.s32.totalorder %s16, 1
      %p55 = scmp.ne.s32.totalorder %s50, %s52
      %p56 = scmp.eq.s32.totalorder %s16, 0
      %p57 = por %p55, %p56
      %p58 = scmp.ne.s32.totalorder %s50, %s52
      %p59 = scmp.eq.s32.totalorder %s21, 1
      %p60 = por %p58, %p59
      %p61 = scmp.ne.s32.totalorder %s52, %s53
      %p62 = scmp.eq.s32.totalorder %s21, 0
      %p63 = por %p61, %p62
      %p64 = scmp.ne.s32.totalorder %s52, %s53
      %p65 = scmp.eq.s32.totalorder %s22, 1
      %p66 = por %p64, %p65
      %p68 = scmp.ne.s32.totalorder %s53, %s67
      %p69 = scmp.eq.s32.totalorder %s22, 0
      %p70 = por %p68, %p69
      %s72 = sadd.s32 %s71, 1
      %p75 = scmp.eq.s32.totalorder %s16, 1
      %p76 = scmp.ne.s32.totalorder %s71, %s73
      %p77 = scmp.eq.s32.totalorder %s16, 0
      %p78 = por %p76, %p77
      %p79 = scmp.ne.s32.totalorder %s71, %s73
      %p80 = scmp.eq.s32.totalorder %s21, 1
      %p81 = por %p79, %p80
      %p82 = scmp.ne.s32.totalorder %s73, %s74
      %p83 = scmp.eq.s32.totalorder %s21, 0
      %p84 = por %p82, %p83
      %p85 = scmp.ne.s32.totalorder %s73, %s74
      %p86 = scmp.eq.s32.totalorder %s22, 1
      %p87 = por %p85, %p86
      %p89 = scmp.ne.s32.totalorder %s74, %s88
      %p90 = scmp.eq.s32.totalorder %s22, 0
      %p91 = por %p89, %p90
      %s92 = ssub.s32 %s16, %s23
      %p93 = scmp.eq.s32.totalorder %s92, 0
      %s95 = sadd.s32 %s94, 1
      %s96 = scalar_select %p93, %s94, %s95
      %p99 = pneg %p93
      %p100 = scmp.eq.s32.totalorder %s16, 1
      %p101 = por %p99, %p100
      %p102 = scmp.ne.s32.totalorder %s94, %s97
      %p103 = scmp.eq.s32.totalorder %s16, 0
      %p104 = por %p102, %p103
      %p105 = scmp.ne.s32.totalorder %s94, %s97
      %p106 = scmp.eq.s32.totalorder %s21, 1
      %p107 = por %p105, %p106
      %p108 = scmp.ne.s32.totalorder %s97, %s98
      %p109 = scmp.eq.s32.totalorder %s21, 0
      %p110 = por %p108, %p109
      %p111 = scmp.ne.s32.totalorder %s97, %s98
      %p112 = scmp.eq.s32.totalorder %s22, 1
      %p113 = por %p111, %p112
      %p115 = scmp.ne.s32.totalorder %s98, %s114
      %p116 = scmp.eq.s32.totalorder %s22, 0
      %p117 = por %p115, %p116
      %p118 = scmp.le.s32.totalorder 1, %s16
      %p119 = scmp.lt.s32.totalorder %s16, 3
      %p120 = pnand %p118, %p119
      %p121 = pneg %p120
      // Predicated region
      $region9: #{tpu_custom_call.1} parent=5 // pred_check
        _
      $region10: #{tpu_custom_call.1} parent=5 // pred_check_branch
        %123 = sbr.rel (%p120) target = $region12
      $region11: #{tpu_custom_call.1} parent=5 // pred_region
        %s124 = ssub.s32 %s16, 1
        // Predicated region
        $region13: #{tpu_custom_call.1} parent=11 // pred_check
          %p125 = pneg %p63
        $region14: #{tpu_custom_call.1} parent=11 // pred_check_branch
          %127 = sbr.rel (%p125) target = $region16
        $region15: #{tpu_custom_call.1} parent=11 // pred_region
          %129 = vsyncadd [#allocation6], 0
          %s130 = sshll.u32 %s1, 4
          %s131 = int_to_ptr.hbm [resolvable:$true] %s130
          %s132 = sshll.u32 [#allocation5], 4
          %s133 = int_to_ptr.vmem [resolvable:$true] %s132
          %138 = dma.hbm_to_vmem [thread:$0]  %s131, 256, %s133, [#allocation6], 64, 64, 4
        $region16: #{tpu_custom_call.1} parent=11 // pred_fallthru
          _
        // Predicated region
        $region17: #{tpu_custom_call.1} parent=11 // pred_check
          %p139 = pneg %p84
        $region18: #{tpu_custom_call.1} parent=11 // pred_check_branch
          %141 = sbr.rel (%p139) target = $region20
        $region19: #{tpu_custom_call.1} parent=11 // pred_region
          _
        $region20: #{tpu_custom_call.1} parent=11 // pred_fallthru
          _
      $region12: #{tpu_custom_call.1} parent=5 // pred_fallthru
        _
      %p142 = scmp.lt.s32.totalorder %s16, 2
      // Predicated region
      $region21: #{tpu_custom_call.1} parent=5 // pred_check
        %p143 = pneg %p142
      $region22: #{tpu_custom_call.1} parent=5 // pred_check_branch
        %145 = sbr.rel (%p143) target = $region24
      $region23: #{tpu_custom_call.1} parent=5 // pred_region
        // Predicated region
        $region25: #{tpu_custom_call.1} parent=23 // pred_check
          %p146 = pneg %p36
        $region26: #{tpu_custom_call.1} parent=23 // pred_check_branch
          %148 = sbr.rel (%p146) target = $region28
        $region27: #{tpu_custom_call.1} parent=23 // pred_region
          %s149 = sand.u32 %s26, 1
          %s150 = scalar_lea.sflag [#allocation3], %s149
          %s151 = sand.u32 %s26, 1
          %s152 = smul.addr %s151, 16
          %s153 = scalar_lea.vmem [#allocation2], %s152
          %155 = vsyncadd %s150, 0
          %s156 = smul.addr %s16, 4
          %s157 = smul.addr %s156, 4
          %s158 = scalar_lea.hbm %s0, %s157
          %s159 = sshll.u32 %s158, 4
          %s160 = int_to_ptr.hbm [resolvable:$true] %s159
          %s161 = sshll.u32 %s153, 4
          %s162 = int_to_ptr.vmem [resolvable:$true] %s161
          %167 = dma.hbm_to_vmem [thread:$0]  %s160, 256, %s162, %s150, 128, 128, 8
        $region28: #{tpu_custom_call.1} parent=23 // pred_fallthru
          _
      $region24: #{tpu_custom_call.1} parent=5 // pred_fallthru
        _
      %p168 = scmp.le.s32.totalorder 1, %s16
      %p169 = scmp.lt.s32.totalorder %s16, 3
      %p170 = pnand %p168, %p169
      %p171 = pneg %p170
      // Predicated region
      $region29: #{tpu_custom_call.1} parent=5 // pred_check
        _
      $region30: #{tpu_custom_call.1} parent=5 // pred_check_branch
        %173 = sbr.rel (%p170) target = $region32
      $region31: #{tpu_custom_call.1} parent=5 // pred_region
        %s174 = ssub.s32 %s16, 1
        %s175 = sand.u32 %s29, 1
        %s176 = scalar_lea.sflag [#allocation3], %s175
        %s177 = sand.u32 %s29, 1
        %s178 = smul.addr %s177, 16
        %s179 = scalar_lea.vmem [#allocation2], %s178
        // Predicated region
        $region33: #{tpu_custom_call.1} parent=31 // pred_check
          %p180 = pneg %p42
        $region34: #{tpu_custom_call.1} parent=31 // pred_check_branch
          %182 = sbr.rel (%p180) target = $region36
        $region35: #{tpu_custom_call.1} parent=31 // pred_region
          %184 = dma.done %s176, 256
        $region36: #{tpu_custom_call.1} parent=31 // pred_fallthru
          _
        // Predicated region
        $region37: #{tpu_custom_call.1} parent=31 // pred_check
          %p185 = pneg %p63
        $region38: #{tpu_custom_call.1} parent=31 // pred_check_branch
          %187 = sbr.rel (%p185) target = $region40
        $region39: #{tpu_custom_call.1} parent=31 // pred_region
          %189 = dma.done [#allocation6], 256
        $region40: #{tpu_custom_call.1} parent=31 // pred_fallthru
          _
        %s190 = sand.u32 %s29, 1
        %s191 = scalar_lea.sflag [#allocation3], %s190
        %s192 = sand.u32 %s29, 1
        %s193 = smul.addr %s192, 16
        %s194 = scalar_lea.vmem [#allocation2], %s193
        %p195 = pneg %p42
        %p196 = pneg %p39
        %p197 = pneg %p63
        %p198 = pneg %p60
        %p199 = pneg %p84
        %p200 = pneg %p81
        %p201 = pneg %p110
        %p202 = pneg %p107
        %s203 = sand.u32 %s97, 1
        %s204 = scalar_lea.sflag [#allocation4], %s203
        %s205 = sand.u32 %s97, 1
        %s206 = smul.addr %s205, 8
        %s207 = scalar_lea.vmem [#allocation7], %s206
        %v209 = vld [vmem:[%s179] sm:$0xff]
        %v210 = vld [vmem:[%s179 + $0x8] sm:$0xff]
        %v212 = vunpack.c.l.b16 %v209
        %v213 = vunpack.c.h.b16 %v209
        %v214 = vpack.c.b16 %v212, %v212
        %v215 = vpack.c.b16 %v213, %v213
        %216 = vrot.lane.b32.xlu0 %v214, 127
        %v217 = vpop.permute.xlu0 %216
        %218 = vrot.lane.b32.xlu0 %v215, 127
        %v219 = vpop.permute.xlu0 %218
        %vm220 = vcmask 1039360
        %v221 = vsel %vm220, %v217, %v219
        %vm223 = vcmask 1043456
        %v225 = vsel %vm223, %v209, %v221
        %vm226 = vcmask 1045504
        %v227 = vsel %vm226, %v225, %v221
        %v229 = vld [vmem:[#allocation5] sm:$0xf]
        %v231 = vunpack.c.l.b16 %v210
        %v232 = vunpack.c.h.b16 %v210
        %v233 = vpack.c.b16 %v231, %v231
        %v234 = vpack.c.b16 %v232, %v232
        %235 = vrot.lane.b32.xlu0 %v233, 127
        %v236 = vpop.permute.xlu0 %235
        %237 = vrot.lane.b32.xlu0 %v234, 127
        %v238 = vpop.permute.xlu0 %237
        %v239 = vsel %vm220, %v236, %v238
        %v242 = vsel %vm223, %v210, %v239
        %v243 = vsel %vm226, %v242, %v239
        %s245 = scalar_lea.vmem [#allocation5], 4
        %v246 = vld [vmem:[%s245] sm:$0xf]
        %vm247 = vcmask 130048
        %v249 = vsel %vm247, %v246, 0
        %251 = vmatpush.bf16.msra.mxu0 0
        %252 = vmatpush.bf16.msra.mxu0 0
        %253 = vmatpush.bf16.msra.mxu0 0
        %254 = vmatpush.bf16.msra.mxu0 0
        %255 = vmatpush.bf16.msra.mxu0 0
        %256 = vmatpush.bf16.msra.mxu0 0
        %257 = vmatpush.bf16.msra.mxu0 0
        %258 = vmatpush.bf16.msra.mxu0 %v243
        %259 = vmatmul.bf16.gmra.mxu0 %v249
        %v260 = vpop.f32.mrf.mxu0
        %v261 = vadd.f32 0.0, %v260
        %v262 = vpop.f32.mrf.mxu0
        %263 = vdwg.mxu0
        %v265 = vsel %vm247, %v229, 0
        %267 = vmatpush.bf16.msra.mxu0 0
        %268 = vmatpush.bf16.msra.mxu0 0
        %269 = vmatpush.bf16.msra.mxu0 0
        %270 = vmatpush.bf16.msra.mxu0 0
        %271 = vmatpush.bf16.msra.mxu0 0
        %272 = vmatpush.bf16.msra.mxu0 0
        %273 = vmatpush.bf16.msra.mxu0 0
        %274 = vmatpush.bf16.msra.mxu0 %v227
        %275 = vmatmul.bf16.gmra.mxu0 %v265
        %v276 = vpop.f32.mrf.mxu0
        %v277 = vadd.f32 %v261, %v276
        %v278 = vpop.f32.mrf.mxu0
        %279 = vdwg.mxu0
        %v282 = vsel %vm223, %v214, %v221
        %v284 = vsel %vm223, %v215, %v219
        %v285 = vsel %vm226, %v282, %v221
        %v286 = vsel %vm226, %v284, %v219
        %s287 = scalar_lea.vmem [#allocation5], 8
        %v288 = vld [vmem:[%s287] sm:$0xf]
        %291 = vrot.lane.b32.xlu0 %v285, 119
        %v292 = vpop.permute.xlu0 %291
        %293 = vrot.lane.b32.xlu0 %v286, 119
        %v294 = vpop.permute.xlu0 %293
        %vm295 = vcmask 973824
        %v296 = vsel %vm295, %v292, %v294
        %v299 = vsel %vm247, %v288, 0
        %301 = vmatpush.bf16.msra.mxu0 0
        %302 = vmatpush.bf16.msra.mxu0 0
        %303 = vmatpush.bf16.msra.mxu0 0
        %304 = vmatpush.bf16.msra.mxu0 0
        %305 = vmatpush.bf16.msra.mxu0 0
        %306 = vmatpush.bf16.msra.mxu0 0
        %307 = vmatpush.bf16.msra.mxu0 0
        %308 = vmatpush.bf16.msra.mxu0 %v296
        %309 = vmatmul.bf16.gmra.mxu0 %v299
        %v310 = vpop.f32.mrf.mxu0
        %v311 = vadd.f32 0.0, %v310
        %v312 = vpop.f32.mrf.mxu0
        %313 = vdwg.mxu0
        %v314 = vadd.f32 %v277, %v311
        %v317 = vsel %vm223, %v233, %v239
        %v319 = vsel %vm223, %v234, %v238
        %v320 = vsel %vm226, %v317, %v239
        %v321 = vsel %vm226, %v319, %v238
        %s322 = scalar_lea.vmem [#allocation5], 12
        %v323 = vld [vmem:[%s322] sm:$0xf]
        %326 = vrot.lane.b32.xlu0 %v320, 119
        %v327 = vpop.permute.xlu0 %326
        %328 = vrot.lane.b32.xlu0 %v321, 119
        %v329 = vpop.permute.xlu0 %328
        %v330 = vsel %vm295, %v327, %v329
        %v333 = vsel %vm247, %v323, 0
        %335 = vmatpush.bf16.msra.mxu0 0
        %336 = vmatpush.bf16.msra.mxu0 0
        %337 = vmatpush.bf16.msra.mxu0 0
        %338 = vmatpush.bf16.msra.mxu0 0
        %339 = vmatpush.bf16.msra.mxu0 0
        %340 = vmatpush.bf16.msra.mxu0 0
        %341 = vmatpush.bf16.msra.mxu0 0
        %342 = vmatpush.bf16.msra.mxu0 %v330
        %343 = vmatmul.bf16.gmra.mxu0 %v333
        %v344 = vpop.f32.mrf.mxu0
        %v345 = vadd.f32 0.0, %v344
        %v346 = vpop.f32.mrf.mxu0
        %347 = vdwg.mxu0
        %v348 = vadd.f32 %v314, %v345
        %v349 = vld [vmem:[%s2] sm:$0xff]
        %351 = vset.pattern.permute.xlu0 0
        %352 = vperm.xlu0 %351, %v349
        %v353 = vpop.permute.xlu0 %352
        %v355 = vadd.f32 %v348, %v353
        %356 = vst [vmem:[%s207] sm:$0xff] %v355
        %s357 = sand.u32 %s97, 1
        %s358 = scalar_lea.sflag [#allocation4], %s357
        %s359 = sand.u32 %s97, 1
        %s360 = smul.addr %s359, 8
        %s361 = scalar_lea.vmem [#allocation7], %s360
        // Predicated region
        $region41: #{tpu_custom_call.1} parent=31 // pred_check
          %p362 = pneg %p107
        $region42: #{tpu_custom_call.1} parent=31 // pred_check_branch
          %364 = sbr.rel (%p362) target = $region44
        $region43: #{tpu_custom_call.1} parent=31 // pred_region
          %366 = vsyncadd %s358, 0
          %s367 = smul.addr %s21, 8
          %s368 = scalar_lea.hbm %s3, %s367
          %s370 = sshll.u32 %s361, 4
          %s371 = int_to_ptr.vmem [resolvable:$true] %s370
          %s372 = sshll.u32 %s368, 4
          %s373 = int_to_ptr.hbm [resolvable:$true] %s372
          %375 = dma.vmem_to_hbm [thread:$0]  %s371, 128, %s373, %s358
        $region44: #{tpu_custom_call.1} parent=31 // pred_fallthru
          _
      $region32: #{tpu_custom_call.1} parent=5 // pred_fallthru
        _
      %p376 = scmp.le.s32.totalorder 2, %s16
      // Predicated region
      $region45: #{tpu_custom_call.1} parent=5 // pred_check
        %p377 = pneg %p376
      $region46: #{tpu_custom_call.1} parent=5 // pred_check_branch
        %379 = sbr.rel (%p377) target = $region48
      $region47: #{tpu_custom_call.1} parent=5 // pred_region
        %s380 = ssub.s32 %s16, 2
        // Predicated region
        $region49: #{tpu_custom_call.1} parent=47 // pred_check
          %p381 = pneg %p113
        $region50: #{tpu_custom_call.1} parent=47 // pred_check_branch
          %383 = sbr.rel (%p381) target = $region52
        $region51: #{tpu_custom_call.1} parent=47 // pred_region
          %s384 = sand.u32 %s98, 1
          %s385 = scalar_lea.sflag [#allocation4], %s384
          %s386 = sand.u32 %s98, 1
          %s387 = smul.addr %s386, 8
          %s388 = scalar_lea.vmem [#allocation7], %s387
          %390 = dma.done %s385, 128
        $region52: #{tpu_custom_call.1} parent=47 // pred_fallthru
          _
      $region48: #{tpu_custom_call.1} parent=5 // pred_fallthru
        _
    $region6: #{tpu_custom_call.1} parent=1 // loop_footer
      %s20 = sadd.s32 1, %s16
    $region7: #{tpu_custom_call.1} parent=1 // loop_footer_branch
      %15 = sbr.rel target = $region3
    $region8: #{tpu_custom_call.1} parent=1 // loop_exit
      _
    %391 = vsyncpa [#allocation3], 1
    %s392 = scalar_lea.sflag [#allocation3], 1
    %393 = vsyncpa %s392, 1
    %394 = vsyncpa [#allocation6], 1
    %395 = vsyncpa [#allocation4], 1
    %s396 = scalar_lea.sflag [#allocation4], 1
    %397 = vsyncpa %s396, 1

</llo_original>
